<compile_context>
chip_gen: v7x
topology: tpu7x:2x2x1
jax: 0.10.0
libtpu: 0.0.40
codegen_flags: <defaults>
</compile_context>

<pallas_src>
import jax
import jax.numpy as jnp
from jax.experimental import pallas as pl
from jax.experimental.pallas import tpu as pltpu


def _action_score_kernel(feats_ref, w1_ref, b1_ref, w2_ref, b2_ref, out_ref):
    # feats_ref : (TN, F)  row tile (f32 or bf16, goes straight to the MXU)
    # w1_ref    : (F, F)   mlp1 weight, (in, out) layout
    # b1_ref    : (1, F)   mlp1 bias (f32)
    # w2_ref    : (1, F)   mlp2 weight as a row vector
    # b2_ref    : (1,)     mlp2 bias, SMEM scalar
    # out_ref   : (TN, 1)
    x = feats_ref[...]  # no upcast; MXU accumulates in f32 below
    h = jnp.dot(x, w1_ref[...], preferred_element_type=jnp.float32)
    h = h + b1_ref[...].astype(jnp.float32)
    h = jnp.where(h > 0, h, 0.01 * h)  # leaky_relu, torch default slope 0.01

    # mlp2 (out width 1): VPU multiply + lane reduction instead of a 1-column
    # matmul -- avoids paying a full MXU push/drain for 1/256 of its width.
    w2 = w2_ref[...].astype(jnp.float32)                    # (1, F)
    s = jnp.sum(h * w2, axis=-1, keepdims=True) + b2_ref[0]  # (TN, 1)
    out_ref[...] = jax.nn.sigmoid(s).astype(out_ref.dtype)


def action_score(feats, w1, b1, w2, b2, *, tile_n=1024):
    """ActionScore forward.

    feats: [N, F] (f32 or bf16). w1: [F, F] (in, out). b1: [F].
    w2: [F, 1]. b2: [1]. Returns [N] scores in feats.dtype.
    """
    N, F = feats.shape
    assert w1.shape == (F, F) and b1.shape == (F,)
    assert w2.shape == (F, 1) and b2.shape == (1,)

    # Row tile: multiple of 8 (sublane rule), capped for tiny inputs. A fixed
    # ~1k-row tile keeps the grid multi-step so BlockSpec double-buffering can
    # hide the feats load and v7x can split the grid across its two TCs.
    tile_n = max(8, (int(tile_n) // 8) * 8)
    n_pad8 = ((N + 7) // 8) * 8
    tile_n = min(tile_n, n_pad8)
    num_tiles = pl.cdiv(N, tile_n)
    n_pad = num_tiles * tile_n
    if n_pad != N:
        feats = jnp.pad(feats, ((0, n_pad - N), (0, 0)))  # padded rows sliced off below

    b1_2d = b1.reshape(1, F).astype(jnp.float32)
    w2_row = w2.reshape(1, F)                       # column vec -> row vec (same order)
    b2_s = b2.reshape(1).astype(jnp.float32)        # SMEM scalar

    out = pl.pallas_call(
        _action_score_kernel,
        out_shape=jax.ShapeDtypeStruct((n_pad, 1), feats.dtype),
        grid_spec=pltpu.PrefetchScalarGridSpec(
            num_scalar_prefetch=0,
            grid=(num_tiles,),
            in_specs=[
                pl.BlockSpec((tile_n, F), lambda i: (i, 0)),        # feats tile (pipelined)
                pl.BlockSpec((F, F), lambda i: (0, 0)),             # w1 (resident)
                pl.BlockSpec((1, F), lambda i: (0, 0)),             # b1 (resident)
                pl.BlockSpec((1, F), lambda i: (0, 0)),             # w2 row (resident)
                pl.BlockSpec(memory_space=pltpu.MemorySpace.SMEM),  # b2 scalar
            ],
            out_specs=pl.BlockSpec((tile_n, 1), lambda i: (i, 0)),
        ),
        compiler_params=pltpu.CompilerParams(
            dimension_semantics=("parallel",),
            # Footprint at tile_n=1024, F=32 (lane-padded to 128) is ~3 MiB
            # double-buffered; 32 MiB keeps headroom under v7x's 64 MiB VMEM.
            vmem_limit_bytes=32 * 1024 * 1024,
        ),
    )(feats, w1, b1_2d, w2_row, b2_s)

    return out[:N, 0]  # torch .squeeze(1) -> shape [N]


def _reference(feats, w1, b1, w2, b2):
    h = feats.astype(jnp.float32) @ w1.astype(jnp.float32) + b1
    h = jnp.where(h > 0, h, 0.01 * h)
    s = h @ w2.astype(jnp.float32) + b2
    return jax.nn.sigmoid(s)[:, 0]


if __name__ == "__main__":
    key = jax.random.PRNGKey(0)
    feat_dim = 32
    k_feats, k_w1, k_b1, k_w2, k_b2 = jax.random.split(key, 5)

    # Deterministic synthetic parameters (PyTorch Linear is (out, in); we store
    # them pre-transposed as (in, out) for the kernel).
    bound1 = 1.0 / (feat_dim ** 0.5)
    w1 = jax.random.uniform(k_w1, (feat_dim, feat_dim), jnp.float32, -bound1, bound1)
    b1 = jax.random.uniform(k_b1, (feat_dim,), jnp.float32, -bound1, bound1)
    w2 = jax.random.uniform(k_w2, (feat_dim, 1), jnp.float32, -bound1, bound1)
    b2 = jax.random.uniform(k_b2, (1,), jnp.float32, -bound1, bound1)

    # Case 1: small batch (N multiple of 8), single grid step.
    # Case 2: ragged N (exercises pad + slice path).
    # Case 3: multi-step grid (exercises pipelined tiling), small tile for demo.
    cases = [
        (8, {}),
        (13, {}),
        (24, {"tile_n": 8}),
    ]
    for idx, (N, kw) in enumerate(cases):
        feats = jax.random.normal(
            jax.random.fold_in(k_feats, idx), (N, feat_dim), dtype=jnp.float32
        )
        out = jax.block_until_ready(action_score(feats, w1, b1, w2, b2, **kw))
        ref = _reference(feats, w1, b1, w2, b2)
        assert out.shape == (N,)
        assert jnp.allclose(out, ref, atol=1e-5, rtol=1e-5), f"mismatch in case {idx}"

    print("KERNEL_OK")
</pallas_src>

<mosaic_0001>
module attributes {stable_mosaic.version = 11 : i64} {
  func.func @_action_score_kernel(%arg0: i32, %arg1: memref<8x32xf32, #tpu.memory_space<vmem>>, %arg2: memref<32x32xf32, #tpu.memory_space<vmem>>, %arg3: memref<1x32xf32, #tpu.memory_space<vmem>>, %arg4: memref<1x32xf32, #tpu.memory_space<vmem>>, %arg5: memref<1xf32, #tpu.memory_space<smem>>, %arg6: memref<8x1xf32, #tpu.memory_space<vmem>>) attributes {dimension_semantics = [#tpu.dimension_semantics<parallel>], iteration_bounds = array<i64: 1>, scalar_prefetch = 0 : i64, scratch_operands = 0 : i64, tpu.core_type = #tpu.core_type<tc>, window_params = [{transform_indices = @transform_0, window_bounds = array<i64: 8, 32>}, {pipeline_mode = #tpu.pipeline_mode<synchronous>, transform_indices = @transform_1, window_bounds = array<i64: 32, 32>}, {pipeline_mode = #tpu.pipeline_mode<synchronous>, transform_indices = @transform_2, window_bounds = array<i64: 1, 32>}, {pipeline_mode = #tpu.pipeline_mode<synchronous>, transform_indices = @transform_3, window_bounds = array<i64: 1, 32>}, {transform_indices = @transform_4, window_bounds = array<i64: 1>}, {transform_indices = @transform_5, window_bounds = array<i64: 8, 1>}]} {
    %c0 = arith.constant 0 : index
    %c0_0 = arith.constant 0 : index
    %0 = vector.load %arg1[%c0, %c0_0] : memref<8x32xf32, #tpu.memory_space<vmem>>, vector<8x32xf32>
    %c0_1 = arith.constant 0 : index
    %c0_2 = arith.constant 0 : index
    %1 = vector.load %arg2[%c0_1, %c0_2] : memref<32x32xf32, #tpu.memory_space<vmem>>, vector<32x32xf32>
    %cst = arith.constant dense<0.000000e+00> : vector<8x32xf32>
    %2 = tpu.matmul %0, %1, %cst {dimension_numbers = #tpu.dot_dimension_numbers<[1], [0], [0], [1], [0, 0, 1, 1], [], []>} : vector<8x32xf32>, vector<32x32xf32>, vector<8x32xf32> -> vector<8x32xf32>
    %c0_3 = arith.constant 0 : index
    %c0_4 = arith.constant 0 : index
    %3 = vector.load %arg3[%c0_3, %c0_4] : memref<1x32xf32, #tpu.memory_space<vmem>>, vector<1x32xf32>
    %4 = vector.broadcast %3 : vector<1x32xf32> to vector<8x32xf32>
    %5 = arith.addf %2, %4 : vector<8x32xf32>
    %cst_5 = arith.constant 0.000000e+00 : f32
    %6 = vector.broadcast %cst_5 : f32 to vector<8x32xf32>
    %7 = arith.cmpf ogt, %5, %6 : vector<8x32xf32>
    %cst_6 = arith.constant 0.00999999977 : f32
    %8 = vector.broadcast %cst_6 : f32 to vector<8x32xf32>
    %9 = arith.mulf %8, %5 : vector<8x32xf32>
    %10 = arith.select %7, %5, %9 : vector<8x32xi1>, vector<8x32xf32>
    %c0_7 = arith.constant 0 : index
    %c0_8 = arith.constant 0 : index
    %11 = vector.load %arg4[%c0_7, %c0_8] : memref<1x32xf32, #tpu.memory_space<vmem>>, vector<1x32xf32>
    %12 = vector.broadcast %11 : vector<1x32xf32> to vector<8x32xf32>
    %13 = arith.mulf %10, %12 : vector<8x32xf32>
    %cst_9 = arith.constant dense<0.000000e+00> : vector<8xf32>
    %14 = vector.multi_reduction <add>, %13, %cst_9 [1] : vector<8x32xf32> to vector<8xf32>
    %15 = vector.shape_cast %14 : vector<8xf32> to vector<8x1xf32>
    %c0_10 = arith.constant 0 : index
    %16 = memref.load %arg5[%c0_10] : memref<1xf32, #tpu.memory_space<smem>>
    %17 = vector.broadcast %16 : f32 to vector<8x1xf32>
    %18 = arith.addf %15, %17 : vector<8x1xf32>
    %19 = arith.negf %18 : vector<8x1xf32>
    %20 = math.exp %19 : vector<8x1xf32>
    %cst_11 = arith.constant 1.000000e+00 : f32
    %21 = vector.broadcast %cst_11 : f32 to vector<8x1xf32>
    %22 = arith.addf %21, %20 : vector<8x1xf32>
    %23 = arith.divf %21, %22 : vector<8x1xf32>
    %c0_12 = arith.constant 0 : index
    %c0_13 = arith.constant 0 : index
    %24 = vector.load %arg6[%c0_12, %c0_13] : memref<8x1xf32, #tpu.memory_space<vmem>>, vector<8x1xf32>
    tpu.vector_store %arg6[%c0_12, %c0_13], %23 {strides = array<i32>} : memref<8x1xf32, #tpu.memory_space<vmem>>, vector<8x1xf32>,
    return
  }
  func.func @transform_0(%arg0: i32) -> (i32, i32) {
    %c0_i32 = arith.constant 0 : i32
    %c0_i32_0 = arith.constant 0 : i32
    return %arg0, %c0_i32 : i32, i32
  }
  func.func @transform_1(%arg0: i32) -> (i32, i32) {
    %c0_i32 = arith.constant 0 : i32
    %c0_i32_0 = arith.constant 0 : i32
    %c0_i32_1 = arith.constant 0 : i32
    return %c0_i32, %c0_i32_0 : i32, i32
  }
  func.func @transform_2(%arg0: i32) -> (i32, i32) {
    %c0_i32 = arith.constant 0 : i32
    %c0_i32_0 = arith.constant 0 : i32
    %c0_i32_1 = arith.constant 0 : i32
    return %c0_i32, %c0_i32_0 : i32, i32
  }
  func.func @transform_3(%arg0: i32) -> (i32, i32) {
    %c0_i32 = arith.constant 0 : i32
    %c0_i32_0 = arith.constant 0 : i32
    %c0_i32_1 = arith.constant 0 : i32
    return %c0_i32, %c0_i32_0 : i32, i32
  }
  func.func @transform_4(%arg0: i32) -> i32 {
    %c0_i32 = arith.constant 0 : i32
    %c0_i32_0 = arith.constant 0 : i32
    return %c0_i32 : i32
  }
  func.func @transform_5(%arg0: i32) -> (i32, i32) {
    %c0_i32 = arith.constant 0 : i32
    %c0_i32_0 = arith.constant 0 : i32
    return %arg0, %c0_i32 : i32, i32
  }
}

</mosaic_0001>

<llo_original>
// kernel: tpu_custom_call.1
$region0: #{tpu_custom_call.1}
  #allocation0 [shape = 'u32[]', space=smem, size = 0x4, offset = 0x4, fixed_abs, tag = 'smem constant byte address 0x4 - core index']
  #allocation1 [shape = 'u32[144,128]{1,0:T(1,128)}', space=vmem, size = 0x12000, scoped, tag = 'internal scratch']
  #allocation2 [shape = 'f32[1]{0:T(128)S(6)}', space=smem, size = 0x200, scoped, tag = 'scoped memory for tpu_custom_call.1']
  %s0 = inlined_call_operand.hbm [shape: f32[8,32], index: 0, kind: input, shape index: {}]
  %s1 = inlined_call_operand.hbm [shape: f32[32,32], index: 1, kind: input, shape index: {}]
  %s2 = inlined_call_operand.vmem [shape: f32[1,32], index: 2, kind: input, shape index: {}]
  %s3 = inlined_call_operand.vmem [shape: f32[1,32], index: 3, kind: input, shape index: {}]
  %s4 = inlined_call_operand.<no memory space> [shape: f32[1], index: 4, kind: input, shape index: {}]
  %s5 = inlined_call_operand.vmem [shape: f32[8,1], index: 5, kind: output, shape index: {}]
  %s6 = sld [smem:[#allocation0]]
  $region38: #{tpu_custom_call.1} parent=0
    _
  %s8 = ssub.s32 1, %s6
  %s9 = scalar_select 0, %s8, %s6
  %10 = sst [smem:[#allocation2]] %s4
  $region1: #{tpu_custom_call.1} parent=0
    #allocation3 [shape = 'u8[4096]{0}', space=vmem, size = 0x1000, scoped, tag = 'input window, operand 0, single buffered']
    #allocation4 [shape = 's32[1]{0}', space=sflag, size = 0x4, scoped, tag = 'scoped memory for tpu_custom_call.1']
    #allocation5 [shape = 'u8[16384]{0}', space=vmem, size = 0x4000, scoped, tag = 'input window, operand 1, single buffered']
    #allocation6 [shape = 's32[1]{0}', space=sflag, size = 0x4, scoped, tag = 'scoped memory for tpu_custom_call.1']
    %11 = vsyncpa [#allocation4], 0
    %12 = vsyncpa [#allocation6], 0
    // Predicated region
    $region2: #{tpu_custom_call.1} parent=1 // pred_check
      _
    $region3: #{tpu_custom_call.1} parent=1 // pred_check_branch
      %14 = sbr.rel (0) target = $region5
    $region4: #{tpu_custom_call.1} parent=1 // pred_region
      %s16 = ssub.s32 128, 128
      %17 = vsyncadd [#allocation4], %s16
      %s19 = sshll.u32 [#allocation3], 4
      %s20 = int_to_ptr.vmem [resolvable:$true] %s19
      %22 = dma.hbm_to_vmem [thread:$0]  %s0, 128, %s20, [#allocation4]
    $region5: #{tpu_custom_call.1} parent=1 // pred_fallthru
      _
    // Predicated region
    $region6: #{tpu_custom_call.1} parent=1 // pred_check
      _
    $region7: #{tpu_custom_call.1} parent=1 // pred_check_branch
      %24 = sbr.rel (0) target = $region9
    $region8: #{tpu_custom_call.1} parent=1 // pred_region
      %s26 = ssub.s32 512, 512
      %27 = vsyncadd [#allocation6], %s26
      %s28 = sshll.u32 [#allocation5], 4
      %s29 = int_to_ptr.vmem [resolvable:$true] %s28
      %34 = dma.hbm_to_vmem [thread:$0]  %s1, 512, %s29, [#allocation6], 128, 128, 8
    $region9: #{tpu_custom_call.1} parent=1 // pred_fallthru
      _
    // Predicated region
    $region10: #{tpu_custom_call.1} parent=1 // pred_check
      _
    $region11: #{tpu_custom_call.1} parent=1 // pred_check_branch
      %36 = sbr.rel (0) target = $region13
    $region12: #{tpu_custom_call.1} parent=1 // pred_region
      _
    $region13: #{tpu_custom_call.1} parent=1 // pred_fallthru
      _
    // Predicated region
    $region14: #{tpu_custom_call.1} parent=1 // pred_check
      _
    $region15: #{tpu_custom_call.1} parent=1 // pred_check_branch
      %38 = sbr.rel (0) target = $region17
    $region16: #{tpu_custom_call.1} parent=1 // pred_region
      _
    $region17: #{tpu_custom_call.1} parent=1 // pred_fallthru
      _
    // Predicated region
    $region18: #{tpu_custom_call.1} parent=1 // pred_check
      _
    $region19: #{tpu_custom_call.1} parent=1 // pred_check_branch
      %40 = sbr.rel (0) target = $region21
    $region20: #{tpu_custom_call.1} parent=1 // pred_region
      _
    $region21: #{tpu_custom_call.1} parent=1 // pred_fallthru
      _
    // Predicated region
    $region22: #{tpu_custom_call.1} parent=1 // pred_check
      _
    $region23: #{tpu_custom_call.1} parent=1 // pred_check_branch
      %42 = sbr.rel (0) target = $region25
    $region24: #{tpu_custom_call.1} parent=1 // pred_region
      %43 = dma.done [#allocation4], 128
    $region25: #{tpu_custom_call.1} parent=1 // pred_fallthru
      _
    // Predicated region
    $region26: #{tpu_custom_call.1} parent=1 // pred_check
      _
    $region27: #{tpu_custom_call.1} parent=1 // pred_check_branch
      %45 = sbr.rel (0) target = $region29
    $region28: #{tpu_custom_call.1} parent=1 // pred_region
      %46 = dma.done [#allocation6], 512
    $region29: #{tpu_custom_call.1} parent=1 // pred_fallthru
      _
    %v47 = vld [vmem:[#allocation3] sm:$0xff]
    %v48 = vld [vmem:[#allocation5] sm:$0xff]
    %v49 = vld [vmem:[#allocation5 + $0x8] sm:$0xff]
    %v50 = vld [vmem:[#allocation5 + $0x10] sm:$0xff]
    %v51 = vld [vmem:[#allocation5 + $0x18] sm:$0xff]
    %v52 = vld [vmem:[%s2] sm:$0x1]
    %v54 = vlaneseq
    %v55 = vshrl.u32 %v54, 7
    %v56 = vsub.s32 0, %v55
    %v57 = vrot.slane %v52, %v56
    %vm59 = vcmask 261120
    %v61 = vsel %vm59, %v47, 0
    %63 = vmatprep.subr.mxu0 0.0
    %64 = vmatpush1.msra.mxu0 %v48
    %65 = vmatprep.subr.mxu0 0.0
    %66 = vmatpush1.msra.mxu0 %v49
    %67 = vmatprep.subr.mxu0 0.0
    %68 = vmatpush1.msra.mxu0 %v50
    %69 = vmatprep.subr.mxu0 0.0
    %70 = vmatpush1.msra.mxu0 %v51
    %71 = vmatprep.subr.mxu0 0.0
    %72 = vmatpush1.msra.mxu0 0.0
    %73 = vmatprep.subr.mxu0 0.0
    %74 = vmatpush1.msra.mxu0 0.0
    %75 = vmatprep.subr.mxu0 0.0
    %76 = vmatpush1.msra.mxu0 0.0
    %77 = vmatprep.subr.mxu0 0.0
    %78 = vmatpush1.msra.mxu0 0.0
    %79 = vmatprep.subr.mxu0 0.0
    %80 = vmatpush1.msra.mxu0 0.0
    %81 = vmatprep.subr.mxu0 0.0
    %82 = vmatpush1.msra.mxu0 0.0
    %83 = vmatprep.subr.mxu0 0.0
    %84 = vmatpush1.msra.mxu0 0.0
    %85 = vmatprep.subr.mxu0 0.0
    %86 = vmatpush1.msra.mxu0 0.0
    %87 = vmatprep.subr.mxu0 0.0
    %88 = vmatpush1.msra.mxu0 0.0
    %89 = vmatprep.subr.mxu0 0.0
    %90 = vmatpush1.msra.mxu0 0.0
    %91 = vmatprep.subr.mxu0 0.0
    %92 = vmatpush1.msra.mxu0 0.0
    %93 = vmatprep.subr.mxu0 0.0
    %94 = vmatpush1.msra.mxu0 0.0
    %95 = vmatprep.subr.mxu0 0.0
    %96 = vmatpush1.msra.mxu0 0.0
    %97 = vmatprep.subr.mxu0 0.0
    %98 = vmatpush1.msra.mxu0 0.0
    %99 = vmatprep.subr.mxu0 0.0
    %100 = vmatpush1.msra.mxu0 0.0
    %101 = vmatprep.subr.mxu0 0.0
    %102 = vmatpush1.msra.mxu0 0.0
    %103 = vmatprep.subr.mxu0 0.0
    %104 = vmatpush1.msra.mxu0 0.0
    %105 = vmatprep.subr.mxu0 0.0
    %106 = vmatpush1.msra.mxu0 0.0
    %107 = vmatprep.subr.mxu0 0.0
    %108 = vmatpush1.msra.mxu0 0.0
    %109 = vmatprep.subr.mxu0 0.0
    %110 = vmatpush1.msra.mxu0 0.0
    %111 = vmatprep.subr.mxu0 0.0
    %112 = vmatpush1.msra.mxu0 0.0
    %113 = vmatprep.subr.mxu0 0.0
    %114 = vmatpush1.msra.mxu0 0.0
    %115 = vmatprep.subr.mxu0 0.0
    %116 = vmatpush1.msra.mxu0 0.0
    %117 = vmatprep.subr.mxu0 0.0
    %118 = vmatpush1.msra.mxu0 0.0
    %119 = vmatprep.subr.mxu0 0.0
    %120 = vmatpush1.msra.mxu0 0.0
    %121 = vmatprep.subr.mxu0 0.0
    %122 = vmatpush1.msra.mxu0 0.0
    %123 = vmatprep.subr.mxu0 0.0
    %124 = vmatpush1.msra.mxu0 0.0
    %125 = vmatprep.subr.mxu0 0.0
    %126 = vmatpush1.msra.mxu0 0.0
    %127 = vmatprep.mubr.f32.mxu0 0.0
    %128 = vmatmul.mubr.f32.gmra.mrb[0].mxu0 %v61
    %v129 = vpop.f32.mrb[0].mxu0
    %v130 = vadd.f32 %v57, %v129
    %v131 = vpop.f32.mrb[0].mxu0
    %132 = vdwg.mxu0
    %vm133 = vcmp.gt.f32.partialorder %v130, 0.0
    %v134 = vmul.f32 %v130, 0.01
    %v135 = vsel %vm133, %v130, %v134
    %v136 = vld [vmem:[%s3] sm:$0x1]
    %v138 = vlaneseq
    %v139 = vshrl.u32 %v138, 7
    %v140 = vsub.s32 0, %v139
    %v141 = vrot.slane %v136, %v140
    %v143 = vmul.f32 %v135, %v141
    %v144 = vsel %vm59, %v143, 0.0
    %145 = vadd.xlane.f32.xlu0 %v144
    %v146 = vpop.xlane.xlu0 %145
    %s147 = sld [smem:[#allocation2]]
    %v148 = vstv %s147
    %v149 = vadd.f32 %v146, %v148
    %v150 = vxor.u32 %v149, 2147483648
    %v151 = vmul.f32 %v150, 1.442695
    %v152 = vpow.pop %v151
    %v153 = vadd.f32 %v152, 1.0
    %v154 = vrcp.pop %v153
    %v155 = vmul.f32 1.0, %v154
    %vm156 = vcmask 7168
    %157 = vst.msk [vmem:[%s5] sm:$0xff] %vm156, %v155
    // Predicated region
    $region30: #{tpu_custom_call.1} parent=1 // pred_check
      _
    $region31: #{tpu_custom_call.1} parent=1 // pred_check_branch
      %159 = sbr.rel (0) target = $region33
    $region32: #{tpu_custom_call.1} parent=1 // pred_region
      _
    $region33: #{tpu_custom_call.1} parent=1 // pred_fallthru
      _
    // Predicated region
    $region34: #{tpu_custom_call.1} parent=1 // pred_check
      _
    $region35: #{tpu_custom_call.1} parent=1 // pred_check_branch
      %161 = sbr.rel (0) target = $region37
    $region36: #{tpu_custom_call.1} parent=1 // pred_region
      _
    $region37: #{tpu_custom_call.1} parent=1 // pred_fallthru
      _
    %162 = vsyncpa [#allocation4], 1
    %163 = vsyncpa [#allocation6], 1

</llo_original>
